<compile_context>
chip_gen: v5e
topology: v5e:2x2
jax: 0.10.0
libtpu: 0.0.40
codegen_flags: <defaults>
</compile_context>

<pallas_src>
import functools

import jax
import jax.numpy as jnp
from jax.experimental import pallas as pl
from jax.experimental.pallas import tpu as pltpu


def _round_up(x, m):
    return ((x + m - 1) // m) * m


def _const_block_spec(block_shape, index_map):
    """BlockSpec for a grid-constant input: single-buffered (saves VMEM)."""
    try:
        return pl.BlockSpec(block_shape, index_map, pipeline_mode=pl.Buffered(1))
    except TypeError:  # older jax without the pipeline_mode kwarg
        return pl.BlockSpec(block_shape, index_map)


def _vmem_cap_bytes():
    try:
        return int(pltpu.get_tpu_info().vmem_capacity_bytes)
    except Exception:
        return 64 * 1024 * 1024  # conservative (v7x per-TensorCore VMEM)


# ---------------------------------------------------------------------------
# Kernels
# ---------------------------------------------------------------------------
def _qkv_folded_kernel(x_ref, w_ref, b_ref, out_ref):
    """out = x @ W' + b where W' already contains the LoRA delta.

    x_ref   : (TM, C)   token tile (compute dtype)
    w_ref   : (C, TN)   folded qkv weight column block
    b_ref   : (1, TN)   bias column block (f32)
    out_ref : (TM, TN)  output tile
    """
    acc = jnp.dot(x_ref[...], w_ref[...], preferred_element_type=jnp.float32)
    out_ref[...] = (acc + b_ref[...]).astype(out_ref.dtype)


def _qkv_lora_kernel(x_ref, wqkv_ref, bqkv_ref, a_ref, b_ref, out_ref, *, dim):
    """Live-adapter path: qkv = x@Wqkv + b, LoRA delta added to q and v.

    x_ref    : (TM, C)   token tile (compute dtype)
    wqkv_ref : (C, 3C)   fused qkv weight (transposed vs torch Linear)
    bqkv_ref : (1, 3C)   fused qkv bias (f32)
    a_ref    : (C, 2r)   [A_q | A_v]            fused LoRA down-projection
    b_ref    : (2r, 2C)  blockdiag(s*B_q, s*B_v) fused LoRA up-projection
    out_ref  : (TM, 3C)  output tile [q | k | v]
    """
    x = x_ref[...]

    qkv = jnp.dot(x, wqkv_ref[...], preferred_element_type=jnp.float32)
    qkv = qkv + bqkv_ref[...]

    # Single K=2r down-projection + single block-diagonal up-projection
    # produce [dq | dv] together; `alpha // r` is pre-folded into b_ref.
    # NOTE: for bf16 compute the f32 `low` accumulator is truncated to bf16
    # before the up-projection (documented extra rounding vs the reference).
    low = jnp.dot(x, a_ref[...], preferred_element_type=jnp.float32)
    delta = jnp.dot(low.astype(b_ref.dtype), b_ref[...],
                    preferred_element_type=jnp.float32)

    # Direct slice stores.  For real ViT widths C is a multiple of 128 so the
    # q/k/v boundaries stay lane-aligned (unmasked full-width vst).
    out_ref[:, :dim] = (qkv[:, :dim] + delta[:, :dim]).astype(out_ref.dtype)
    out_ref[:, dim:2 * dim] = qkv[:, dim:2 * dim].astype(out_ref.dtype)
    out_ref[:, 2 * dim:] = (qkv[:, 2 * dim:] + delta[:, dim:]).astype(out_ref.dtype)


# ---------------------------------------------------------------------------
# Wrapper
# ---------------------------------------------------------------------------
def lora_qkv_forward(x, w_qkv_t, b_qkv, a_q_t, b_q_t, a_v_t, b_v_t, *,
                     alpha, r, row_tile=512, compute_dtype=jnp.bfloat16,
                     out_dtype=None, fold_lora=True):
    """x: (B, N, C) -> (B, N, 3C), matching _LoRA_qkv_timm.forward.

    compute_dtype: matmul operand dtype (bf16 default for v6e/v7x MXU rate;
                   accumulation is always f32).
    out_dtype:     output dtype (defaults to x.dtype; pass bf16 when the
                   downstream attention runs in bf16 to halve writeback/VMEM).
    fold_lora:     True = frozen-adapter inference fast path (LoRA product
                   folded into Wqkv on the host); False = live-adapter path.
    """
    B, N, C = x.shape
    M = B * N
    out_dt = jnp.dtype(x.dtype if out_dtype is None else out_dtype)
    cdt = jnp.dtype(compute_dtype if compute_dtype is not None else jnp.bfloat16)
    scale = float(alpha // r)  # matches PyTorch's integer division

    # ---- row tiling: big tiles, minimal padded-row waste ----
    row_tile = max(8, int(row_tile))
    grid_m0 = -(-M // row_tile)
    tm = _round_up(-(-M // grid_m0), 8)
    grid_m = -(-M // tm)
    m_pad = grid_m * tm

    x2d = x.reshape(M, C).astype(cdt)
    if m_pad != M:
        # TODO(synk): rely on Pallas partial-boundary blocks to drop this copy
        # (only the last row tile is ragged and the matmul is row-local).
        x2d = jnp.pad(x2d, ((0, m_pad - M), (0, 0)))

    bias2d = b_qkv.reshape(1, 3 * C).astype(jnp.float32)
    cdt_sz = cdt.itemsize
    out_sz = out_dt.itemsize

    if fold_lora:
        # ---- inference fast path: fold scale*A@B into the base weight ----
        delta_q = scale * jnp.dot(a_q_t.astype(jnp.float32),
                                  b_q_t.astype(jnp.float32))      # (C, C)
        delta_v = scale * jnp.dot(a_v_t.astype(jnp.float32),
                                  b_v_t.astype(jnp.float32))      # (C, C)
        w = w_qkv_t.astype(jnp.float32)
        w = w.at[:, :C].add(delta_q).at[:, 2 * C:].add(delta_v)
        w = w.astype(cdt)                                          # (C, 3C)

        # Column-split q|k|v across a second parallel grid axis when the row
        # grid is too short to feed both v7x TensorCores.  Requires 128-lane
        # aligned column blocks, i.e. C % 128 == 0 (true for ViT-S/B/L/H).
        grid_n = 3 if (grid_m == 1 and C % 128 == 0) else 1
        tn = (3 * C) // grid_n

        if grid_n == 1:
            w_spec = _const_block_spec((C, tn), lambda i, j: (0, 0))
            bias_spec = _const_block_spec((1, tn), lambda i, j: (0, 0))
            weight_bufs = 1
        else:  # block index varies with j -> keep default double buffering
            w_spec = pl.BlockSpec((C, tn), lambda i, j: (0, j))
            bias_spec = pl.BlockSpec((1, tn), lambda i, j: (0, j))
            weight_bufs = 2

        flops = 2 * m_pad * C * 3 * C
        bytes_accessed = (x2d.size * cdt_sz + w.size * cdt_sz
                          + bias2d.size * 4 + m_pad * 3 * C * out_sz)
        vmem_need = (2 * tm * C * cdt_sz              # x tile, double-buffered
                     + weight_bufs * C * tn * cdt_sz  # W'
                     + weight_bufs * 8 * tn * 4       # bias (sublane-padded)
                     + 2 * tm * tn * out_sz           # out tile, double-buffered
                     + tm * tn * 4)                   # in-kernel f32 accumulator

        grid = (grid_m, grid_n)
        dims = ("parallel", "parallel")
        in_specs = [pl.BlockSpec((tm, C), lambda i, j: (i, 0)), w_spec, bias_spec]
        out_spec = pl.BlockSpec((tm, tn), lambda i, j: (i, j))
        operands = (x2d, w, bias2d)
        kernel = _qkv_folded_kernel
    else:
        # ---- live-adapter path: fuse + pre-scale LoRA weights on the host ----
        rq = a_q_t.shape[1]
        rv = a_v_t.shape[1]
        r2 = rq + rv
        a_fused = jnp.concatenate([a_q_t, a_v_t], axis=1).astype(cdt)     # (C, 2r)
        b_fused = jnp.zeros((r2, 2 * C), jnp.float32)
        b_fused = b_fused.at[:rq, :C].set(scale * b_q_t.astype(jnp.float32))
        b_fused = b_fused.at[rq:, C:].set(scale * b_v_t.astype(jnp.float32))
        b_fused = b_fused.astype(cdt)                                     # (2r, 2C)
        w = w_qkv_t.astype(cdt)                                           # (C, 3C)

        flops = (2 * m_pad * C * 3 * C
                 + 2 * m_pad * C * r2
                 + 2 * m_pad * r2 * 2 * C)
        bytes_accessed = (x2d.size * cdt_sz + w.size * cdt_sz
                          + a_fused.size * cdt_sz + b_fused.size * cdt_sz
                          + bias2d.size * 4 + m_pad * 3 * C * out_sz)
        vmem_need = (2 * tm * C * cdt_sz                                  # x
                     + (w.size + a_fused.size + b_fused.size) * cdt_sz    # weights x1
                     + 8 * 3 * C * 4                                      # bias
                     + 2 * tm * 3 * C * out_sz                            # out
                     + tm * (3 * C + 2 * C + max(r2, 128)) * 4)           # f32 temps

        grid = (grid_m,)
        dims = ("parallel",)
        in_specs = [
            pl.BlockSpec((tm, C), lambda i: (i, 0)),                # x tile
            _const_block_spec((C, 3 * C), lambda i: (0, 0)),        # Wqkv
            _const_block_spec((1, 3 * C), lambda i: (0, 0)),        # bias
            _const_block_spec((C, r2), lambda i: (0, 0)),           # [A_q | A_v]
            _const_block_spec((r2, 2 * C), lambda i: (0, 0)),       # blockdiag(B)
        ]
        out_spec = pl.BlockSpec((tm, 3 * C), lambda i: (i, 0))
        operands = (x2d, w, bias2d, a_fused, b_fused)
        kernel = functools.partial(_qkv_lora_kernel, dim=C)

    cost = pl.CostEstimate(flops=int(flops), transcendentals=0,
                           bytes_accessed=int(bytes_accessed))

    # Generation-aware VMEM limit: sized from actual need (with slack), capped
    # below the physical VMEM of the current chip generation.
    vmem_cap = _vmem_cap_bytes()
    vmem_limit = int(min(max(vmem_need * 3 // 2, 32 * 1024 * 1024),
                         max(vmem_cap - (2 << 20), 16 << 20)))

    out2d = pl.pallas_call(
        kernel,
        out_shape=jax.ShapeDtypeStruct((m_pad, 3 * C), out_dt),
        grid_spec=pltpu.PrefetchScalarGridSpec(
            num_scalar_prefetch=0,
            grid=grid,
            in_specs=in_specs,
            out_specs=out_spec,
        ),
        compiler_params=pltpu.CompilerParams(
            dimension_semantics=dims, vmem_limit_bytes=vmem_limit),
        cost_estimate=cost,
    )(*operands)

    return out2d[:M].reshape(B, N, 3 * C)


# ---------------------------------------------------------------------------
# Plain-JAX reference (mirrors the PyTorch forward, high-precision f32)
# ---------------------------------------------------------------------------
def _reference(x, w_qkv_t, b_qkv, a_q_t, b_q_t, a_v_t, b_v_t, *, alpha, r):
    C = x.shape[-1]
    scale = alpha // r
    hp = jax.lax.Precision.HIGHEST
    qkv = jnp.einsum("bnc,cd->bnd", x, w_qkv_t, precision=hp) + b_qkv
    new_q = jnp.einsum("bnr,rc->bnc",
                       jnp.einsum("bnc,cr->bnr", x, a_q_t, precision=hp),
                       b_q_t, precision=hp)
    new_v = jnp.einsum("bnr,rc->bnc",
                       jnp.einsum("bnc,cr->bnr", x, a_v_t, precision=hp),
                       b_v_t, precision=hp)
    qkv = qkv.at[:, :, :C].add(scale * new_q)
    qkv = qkv.at[:, :, -C:].add(scale * new_v)
    return qkv


if __name__ == "__main__":
    # Small shapes consistent with the module: (B, N, C) tokens, fused qkv.
    B, N, C = 2, 8, 32
    r, alpha = 4, 8

    key = jax.random.PRNGKey(0)
    kx, kw, kb, kaq, kbq, kav, kbv = jax.random.split(key, 7)

    x = jax.random.normal(kx, (B, N, C), dtype=jnp.float32)
    # nn.Linear(dim, 3*dim) -> weight (3C, C); stored transposed as (C, 3C).
    w_qkv_t = jax.random.normal(kw, (C, 3 * C), dtype=jnp.float32) * 0.05
    b_qkv = jax.random.normal(kb, (3 * C,), dtype=jnp.float32) * 0.05
    # LoRA: A (r, C) -> transposed (C, r); B (C, r) -> transposed (r, C).
    a_q_t = jax.random.normal(kaq, (C, r), dtype=jnp.float32) * 0.1
    b_q_t = jax.random.normal(kbq, (r, C), dtype=jnp.float32) * 0.1
    a_v_t = jax.random.normal(kav, (C, r), dtype=jnp.float32) * 0.1
    b_v_t = jax.random.normal(kbv, (r, C), dtype=jnp.float32) * 0.1

    ref = _reference(x, w_qkv_t, b_qkv, a_q_t, b_q_t, a_v_t, b_v_t,
                     alpha=alpha, r=r)

    # 1) folded (inference) fast path, f32 compute.
    out = lora_qkv_forward(x, w_qkv_t, b_qkv, a_q_t, b_q_t, a_v_t, b_v_t,
                           alpha=alpha, r=r, compute_dtype=jnp.float32,
                           fold_lora=True)
    out = jax.block_until_ready(out)
    assert out.shape == (B, N, 3 * C)
    assert jnp.allclose(out, ref, atol=5e-3, rtol=5e-3)

    # 2) live-adapter (non-folded) path, f32 compute.
    out_live = lora_qkv_forward(x, w_qkv_t, b_qkv, a_q_t, b_q_t, a_v_t, b_v_t,
                                alpha=alpha, r=r, compute_dtype=jnp.float32,
                                fold_lora=False)
    out_live = jax.block_until_ready(out_live)
    assert jnp.allclose(out_live, ref, atol=5e-3, rtol=5e-3)

    # 3) default bf16-operand path (production default for v6e/v7x).
    out_bf = lora_qkv_forward(x, w_qkv_t, b_qkv, a_q_t, b_q_t, a_v_t, b_v_t,
                              alpha=alpha, r=r)
    out_bf = jax.block_until_ready(out_bf)
    assert jnp.allclose(out_bf.astype(jnp.float32), ref, atol=1e-1, rtol=1e-1)

    # 4) ragged token count (M = 14) to exercise the padded-M path.
    x_rag = x[:, :7, :]
    ref_rag = _reference(x_rag, w_qkv_t, b_qkv, a_q_t, b_q_t, a_v_t, b_v_t,
                         alpha=alpha, r=r)
    out_rag = lora_qkv_forward(x_rag, w_qkv_t, b_qkv, a_q_t, b_q_t, a_v_t,
                               b_v_t, alpha=alpha, r=r,
                               compute_dtype=jnp.float32)
    out_rag = jax.block_until_ready(out_rag)
    assert jnp.allclose(out_rag, ref_rag, atol=5e-3, rtol=5e-3)

    # 5) C = 128, single row tile: exercises the 2-D (rows x q|k|v-columns)
    #    grid used to feed both v7x TensorCores at small M.
    C2, N2 = 128, 8
    k2 = jax.random.split(jax.random.PRNGKey(1), 7)
    x2 = jax.random.normal(k2[0], (1, N2, C2), dtype=jnp.float32)
    w2 = jax.random.normal(k2[1], (C2, 3 * C2), dtype=jnp.float32) * 0.05
    bb2 = jax.random.normal(k2[2], (3 * C2,), dtype=jnp.float32) * 0.05
    aq2 = jax.random.normal(k2[3], (C2, r), dtype=jnp.float32) * 0.1
    bq2 = jax.random.normal(k2[4], (r, C2), dtype=jnp.float32) * 0.1
    av2 = jax.random.normal(k2[5], (C2, r), dtype=jnp.float32) * 0.1
    bv2 = jax.random.normal(k2[6], (r, C2), dtype=jnp.float32) * 0.1
    ref2 = _reference(x2, w2, bb2, aq2, bq2, av2, bv2, alpha=alpha, r=r)
    out2 = lora_qkv_forward(x2, w2, bb2, aq2, bq2, av2, bv2, alpha=alpha, r=r,
                            compute_dtype=jnp.float32, fold_lora=True)
    out2 = jax.block_until_ready(out2)
    assert jnp.allclose(out2, ref2, atol=5e-3, rtol=5e-3)

    print("KERNEL_OK")
</pallas_src>

<mosaic_0001>
module attributes {stable_mosaic.version = 11 : i64} {
  func.func @_qkv_folded_kernel(%arg0: i32, %arg1: i32, %arg2: memref<16x32xf32, #tpu.memory_space<vmem>>, %arg3: memref<32x96xf32, #tpu.memory_space<vmem>>, %arg4: memref<1x96xf32, #tpu.memory_space<vmem>>, %arg5: memref<16x96xf32, #tpu.memory_space<vmem>>) attributes {dimension_semantics = [#tpu.dimension_semantics<parallel>, #tpu.dimension_semantics<parallel>], iteration_bounds = array<i64: 1, 1>, scalar_prefetch = 0 : i64, scratch_operands = 0 : i64, tpu.core_type = #tpu.core_type<tc>, window_params = [{transform_indices = @transform_0, window_bounds = array<i64: 16, 32>}, {pipeline_mode = #tpu.pipeline_mode<synchronous>, transform_indices = @transform_1, window_bounds = array<i64: 32, 96>}, {pipeline_mode = #tpu.pipeline_mode<synchronous>, transform_indices = @transform_2, window_bounds = array<i64: 1, 96>}, {transform_indices = @transform_3, window_bounds = array<i64: 16, 96>}]} {
    %c0 = arith.constant 0 : index
    %c0_0 = arith.constant 0 : index
    %0 = vector.load %arg2[%c0, %c0_0] : memref<16x32xf32, #tpu.memory_space<vmem>>, vector<16x32xf32>
    %c0_1 = arith.constant 0 : index
    %c0_2 = arith.constant 0 : index
    %1 = vector.load %arg3[%c0_1, %c0_2] : memref<32x96xf32, #tpu.memory_space<vmem>>, vector<32x96xf32>
    %cst = arith.constant dense<0.000000e+00> : vector<16x96xf32>
    %2 = tpu.matmul %0, %1, %cst {dimension_numbers = #tpu.dot_dimension_numbers<[1], [0], [0], [1], [0, 0, 1, 1], [], []>} : vector<16x32xf32>, vector<32x96xf32>, vector<16x96xf32> -> vector<16x96xf32>
    %c0_3 = arith.constant 0 : index
    %c0_4 = arith.constant 0 : index
    %3 = vector.load %arg4[%c0_3, %c0_4] : memref<1x96xf32, #tpu.memory_space<vmem>>, vector<1x96xf32>
    %4 = vector.broadcast %3 : vector<1x96xf32> to vector<16x96xf32>
    %5 = arith.addf %2, %4 : vector<16x96xf32>
    %c0_5 = arith.constant 0 : index
    %c0_6 = arith.constant 0 : index
    %6 = vector.load %arg5[%c0_5, %c0_6] : memref<16x96xf32, #tpu.memory_space<vmem>>, vector<16x96xf32>
    tpu.vector_store %arg5[%c0_5, %c0_6], %5 {strides = array<i32>} : memref<16x96xf32, #tpu.memory_space<vmem>>, vector<16x96xf32>,
    return
  }
  func.func @transform_0(%arg0: i32, %arg1: i32) -> (i32, i32) {
    %c0_i32 = arith.constant 0 : i32
    %c0_i32_0 = arith.constant 0 : i32
    return %arg0, %c0_i32 : i32, i32
  }
  func.func @transform_1(%arg0: i32, %arg1: i32) -> (i32, i32) {
    %c0_i32 = arith.constant 0 : i32
    %c0_i32_0 = arith.constant 0 : i32
    %c0_i32_1 = arith.constant 0 : i32
    return %c0_i32, %c0_i32_0 : i32, i32
  }
  func.func @transform_2(%arg0: i32, %arg1: i32) -> (i32, i32) {
    %c0_i32 = arith.constant 0 : i32
    %c0_i32_0 = arith.constant 0 : i32
    %c0_i32_1 = arith.constant 0 : i32
    return %c0_i32, %c0_i32_0 : i32, i32
  }
  func.func @transform_3(%arg0: i32, %arg1: i32) -> (i32, i32) {
    %c0_i32 = arith.constant 0 : i32
    return %arg0, %arg1 : i32, i32
  }
}

</mosaic_0001>

<llo_original>
// kernel: tpu_custom_call.1
$region0: #{tpu_custom_call.1}
  #allocation0 [shape = 'u32[]', space=smem, size = 0x4, offset = 0x4, fixed_abs, tag = 'smem constant byte address 0x4 - core index']
  #allocation1 [shape = 'u32[72,128]{1,0:T(1,128)}', space=vmem, size = 0x9000, scoped, tag = 'internal scratch']
  %s0 = inlined_call_operand.hbm [shape: f32[16,32], index: 0, kind: input, shape index: {}]
  %s1 = inlined_call_operand.hbm [shape: f32[32,96], index: 1, kind: input, shape index: {}]
  %s2 = inlined_call_operand.vmem [shape: f32[1,96], index: 2, kind: input, shape index: {}]
  %s3 = inlined_call_operand.hbm [shape: f32[16,96], index: 3, kind: output, shape index: {}]
  %s4 = sld [smem:[#allocation0]]
  $region30: #{tpu_custom_call.1} parent=0
    _
  %s6 = ssub.s32 1, %s4
  %s7 = scalar_select 0, %s6, %s4
  $region1: #{tpu_custom_call.1} parent=0
    #allocation2 [shape = 'u8[8192]{0}', space=vmem, size = 0x2000, scoped, tag = 'input window, operand 0, single buffered']
    #allocation3 [shape = 's32[1]{0}', space=sflag, size = 0x4, scoped, tag = 'scoped memory for tpu_custom_call.1']
    #allocation4 [shape = 's32[1]{0}', space=sflag, size = 0x4, scoped, tag = 'scoped memory for tpu_custom_call.1']
    #allocation5 [shape = 'u8[16384]{0}', space=vmem, size = 0x4000, scoped, tag = 'input window, operand 1, single buffered']
    #allocation6 [shape = 's32[1]{0}', space=sflag, size = 0x4, scoped, tag = 'scoped memory for tpu_custom_call.1']
    #allocation7 [shape = 'u8[8192]{0}', space=vmem, size = 0x2000, scoped, tag = 'output window, operand 0, single buffered']
    %8 = vsyncpa [#allocation3], 0
    %9 = vsyncpa [#allocation6], 0
    %10 = vsyncpa [#allocation4], 0
    // Predicated region
    $region2: #{tpu_custom_call.1} parent=1 // pred_check
      _
    $region3: #{tpu_custom_call.1} parent=1 // pred_check_branch
      %12 = sbr.rel (0) target = $region5
    $region4: #{tpu_custom_call.1} parent=1 // pred_region
      %14 = vsyncadd [#allocation3], 0
      %s15 = sshll.u32 %s0, 4
      %s16 = int_to_ptr.hbm [resolvable:$true] %s15
      %s17 = sshll.u32 [#allocation2], 4
      %s18 = int_to_ptr.vmem [resolvable:$true] %s17
      %23 = dma.hbm_to_vmem [thread:$0]  %s16, 256, %s18, [#allocation3], 128, 128, 8
    $region5: #{tpu_custom_call.1} parent=1 // pred_fallthru
      _
    // Predicated region
    $region6: #{tpu_custom_call.1} parent=1 // pred_check
      _
    $region7: #{tpu_custom_call.1} parent=1 // pred_check_branch
      %25 = sbr.rel (0) target = $region9
    $region8: #{tpu_custom_call.1} parent=1 // pred_region
      %27 = vsyncadd [#allocation6], 0
      %s28 = sshll.u32 %s1, 4
      %s29 = int_to_ptr.hbm [resolvable:$true] %s28
      %s30 = sshll.u32 [#allocation5], 4
      %s31 = int_to_ptr.vmem [resolvable:$true] %s30
      %36 = dma.hbm_to_vmem [thread:$0]  %s29, 512, %s31, [#allocation6], 128, 128, 8
    $region9: #{tpu_custom_call.1} parent=1 // pred_fallthru
      _
    // Predicated region
    $region10: #{tpu_custom_call.1} parent=1 // pred_check
      _
    $region11: #{tpu_custom_call.1} parent=1 // pred_check_branch
      %38 = sbr.rel (0) target = $region13
    $region12: #{tpu_custom_call.1} parent=1 // pred_region
      _
    $region13: #{tpu_custom_call.1} parent=1 // pred_fallthru
      _
    // Predicated region
    $region14: #{tpu_custom_call.1} parent=1 // pred_check
      _
    $region15: #{tpu_custom_call.1} parent=1 // pred_check_branch
      %40 = sbr.rel (0) target = $region17
    $region16: #{tpu_custom_call.1} parent=1 // pred_region
      %42 = dma.done [#allocation3], 256
    $region17: #{tpu_custom_call.1} parent=1 // pred_fallthru
      _
    // Predicated region
    $region18: #{tpu_custom_call.1} parent=1 // pred_check
      _
    $region19: #{tpu_custom_call.1} parent=1 // pred_check_branch
      %44 = sbr.rel (0) target = $region21
    $region20: #{tpu_custom_call.1} parent=1 // pred_region
      %46 = dma.done [#allocation6], 512
    $region21: #{tpu_custom_call.1} parent=1 // pred_fallthru
      _
    %v47 = vld [vmem:[#allocation2] sm:$0xff]
    %v48 = vld [vmem:[#allocation2 + $0x8] sm:$0xff]
    %v49 = vld [vmem:[#allocation5] sm:$0xff]
    %v50 = vld [vmem:[#allocation5 + $0x8] sm:$0xff]
    %v51 = vld [vmem:[#allocation5 + $0x10] sm:$0xff]
    %v52 = vld [vmem:[#allocation5 + $0x18] sm:$0xff]
    %v53 = vld [vmem:[%s2] sm:$0x1]
    %v55 = vperm.slane %v53, 0
    %vm57 = vcmask 261120
    %v59 = vsel %vm57, %v47, 0
    %v62 = vsel %vm57, %v48, 0
    %64 = vmatpush.msra.mxu0 0.0
    %65 = vmatpush.msra.mxu0 0.0
    %66 = vmatpush.msra.mxu0 0.0
    %67 = vmatpush.msra.mxu0 0.0
    %68 = vmatpush.msra.mxu0 0.0
    %69 = vmatpush.msra.mxu0 0.0
    %70 = vmatpush.msra.mxu0 0.0
    %71 = vmatpush.msra.mxu0 0.0
    %72 = vmatpush.msra.mxu0 0.0
    %73 = vmatpush.msra.mxu0 0.0
    %74 = vmatpush.msra.mxu0 0.0
    %75 = vmatpush.msra.mxu0 0.0
    %76 = vmatpush.msra.mxu0 %v52
    %77 = vmatpush.msra.mxu0 %v51
    %78 = vmatpush.msra.mxu0 %v50
    %79 = vmatpush.msra.mxu0 %v49
    %80 = vmatmul.f32.gmra.mxu0 %v59
    %v81 = vpop.f32.mrf.mxu0
    %v82 = vadd.f32 %v55, %v81
    %83 = vmatmul.f32.gmra.mxu0 %v62
    %v84 = vpop.f32.mrf.mxu0
    %v85 = vadd.f32 %v55, %v84
    %86 = vdwg.mxu0
    %vm87 = vcmask 785408
    %88 = vst.msk [vmem:[#allocation7] sm:$0xff] %vm87, %v82
    %89 = vst.msk [vmem:[#allocation7 + $0x8] sm:$0xff] %vm87, %v85
    // Predicated region
    $region22: #{tpu_custom_call.1} parent=1 // pred_check
      _
    $region23: #{tpu_custom_call.1} parent=1 // pred_check_branch
      %91 = sbr.rel (0) target = $region25
    $region24: #{tpu_custom_call.1} parent=1 // pred_region
      %93 = vsyncadd [#allocation4], 0
      %s94 = sshll.u32 [#allocation7], 4
      %s95 = int_to_ptr.vmem [resolvable:$true] %s94
      %s96 = sshll.u32 %s3, 4
      %s97 = int_to_ptr.hbm [resolvable:$true] %s96
      %102 = dma.vmem_to_hbm [thread:$0]  %s95, 256, %s97, [#allocation4], 128, 128, 8
    $region25: #{tpu_custom_call.1} parent=1 // pred_fallthru
      _
    // Predicated region
    $region26: #{tpu_custom_call.1} parent=1 // pred_check
      _
    $region27: #{tpu_custom_call.1} parent=1 // pred_check_branch
      %104 = sbr.rel (0) target = $region29
    $region28: #{tpu_custom_call.1} parent=1 // pred_region
      %106 = dma.done [#allocation4], 256
    $region29: #{tpu_custom_call.1} parent=1 // pred_fallthru
      _
    %107 = vsyncpa [#allocation3], 1
    %108 = vsyncpa [#allocation6], 1
    %109 = vsyncpa [#allocation4], 1

</llo_original>
